<compile_context>
chip_gen: v5e
topology: v5e:2x2
jax: 0.10.0
libtpu: 0.0.40
codegen_flags: <defaults>
</compile_context>

<pallas_src>
import functools

import jax
import jax.numpy as jnp
from jax import lax
from jax.experimental import pallas as pl
from jax.experimental.pallas import tpu as pltpu


def _round_up(x, m):
    return ((x + m - 1) // m) * m


def _sublane_multiple(dtype):
    itemsize = jnp.dtype(dtype).itemsize
    return {4: 8, 2: 16, 1: 32}.get(itemsize, 8)


def _chip_budgets():
    """Return (target_block_bytes, vmem_limit_bytes), chip-aware."""
    try:
        cap = int(pltpu.get_tpu_info().vmem_capacity_bytes)
    except Exception:
        cap = 64 * 1024 * 1024  # conservative default (v7x per-TC VMEM)
    if cap >= 128 * 1024 * 1024:          # v5e / v6e
        return 12 * 1024 * 1024, 64 * 1024 * 1024
    # v7x (64 MiB per TC) or unknown: keep 2x(block) + scratch well under cap.
    return 8 * 1024 * 1024, 40 * 1024 * 1024


# ---------------------------------------------------------------------------
# Kernels
# ---------------------------------------------------------------------------

def _gap_single_kernel(x_ref, o_ref, *, hw):
    """Full spatial extent in one block: sum, divide, store. No scratch."""
    x = x_ref[...].astype(jnp.float32)
    o_ref[...] = (jnp.sum(x, axis=1, keepdims=True) / jnp.float32(hw)).astype(
        o_ref.dtype)


def _gap_tiled_kernel(x_ref, o_ref, acc_ref, *, hw, hw_tile, num_k):
    """Spatial axis tiled on the last grid axis; (rows, 128) f32 accumulator."""
    k = pl.program_id(1)
    groups = hw_tile // 128                   # static
    rem = hw - (num_k - 1) * hw_tile          # static, 0 < rem <= hw_tile
    full_groups_last = rem // 128             # static
    rem_lanes = rem % 128                     # static

    @pl.when(k == 0)
    def _init():
        acc_ref[...] = jnp.zeros_like(acc_ref)

    def _add_groups(n_groups):
        # Lane-dense accumulate: elementwise VALU adds only, no XLU work.
        def body(g, carry):
            off = pl.multiple_of(g * 128, 128)
            acc_ref[...] += x_ref[:, pl.ds(off, 128)].astype(jnp.float32)
            return carry
        lax.fori_loop(0, n_groups, body, 0)

    if rem == hw_tile:
        # H*W divides evenly into tiles: every step takes the unmasked path.
        _add_groups(groups)
    else:
        @pl.when(k < num_k - 1)
        def _hot():
            _add_groups(groups)

        @pl.when(k == num_k - 1)
        def _ragged_last():
            _add_groups(full_groups_last)
            if rem_lanes:
                off = full_groups_last * 128
                tail = x_ref[:, pl.ds(off, 128)].astype(jnp.float32)
                lane = lax.broadcasted_iota(jnp.int32, (1, 128), 1)
                acc_ref[...] += jnp.where(lane < rem_lanes, tail, 0.0)

    @pl.when(k == num_k - 1)
    def _finalize():
        total = jnp.sum(acc_ref[...], axis=1, keepdims=True)  # one XLU reduce
        o_ref[...] = (total / jnp.float32(hw)).astype(o_ref.dtype)


# ---------------------------------------------------------------------------
# Wrapper
# ---------------------------------------------------------------------------

def global_avg_pool2d(x_nchw, *, target_block_bytes=None, vmem_limit_bytes=None):
    """(N, C, H, W) -> (N, C): global average over spatial dims.

    Matches torch.nn.functional.adaptive_avg_pool2d(x, 1).view(N, -1).
    """
    N, C, H, W = x_nchw.shape
    R, HW = N * C, H * W
    dtype = x_nchw.dtype
    itemsize = jnp.dtype(dtype).itemsize
    sub = _sublane_multiple(dtype)

    auto_target, auto_limit = _chip_budgets()
    if target_block_bytes is None:
        target_block_bytes = auto_target
    if vmem_limit_bytes is None:
        vmem_limit_bytes = auto_limit

    # Free row-major reshape: no transpose, no extra HBM pass.
    x = x_nchw.reshape(R, HW)

    hw_padded = _round_up(HW, 128)  # lane padding that lands in VMEM

    def pick_row_tile(max_rows):
        if R <= sub:
            return R                            # full dim: always legal
        r = min(_round_up(R, sub), max_rows)
        # Give the "parallel" row axis >= 2 blocks so both TensorCores
        # (v7x megacore) get work even at small batch.
        r = min(r, _round_up(pl.cdiv(R, 2), sub))
        return max(r, sub)

    single_spatial = hw_padded * itemsize * sub <= target_block_bytes

    if not single_spatial:
        r_tile = pick_row_tile(512)
        rt_pad = _round_up(r_tile, sub)
        hw_tile = max(128, (target_block_bytes // (rt_pad * itemsize)) // 128 * 128)
        hw_tile = min(hw_tile, hw_padded)
        num_k = pl.cdiv(HW, hw_tile)
        if num_k == 1:
            # Degenerate tiny budget: no point tiling the lane axis.
            single_spatial = True

    if single_spatial:
        hw_tile = HW
        rows_fit = max(sub,
                       (target_block_bytes // (hw_padded * itemsize)) // sub * sub)
        r_tile = pick_row_tile(rows_fit)
        grid = (pl.cdiv(R, r_tile),)
        kernel = functools.partial(_gap_single_kernel, hw=HW)
        in_specs = [pl.BlockSpec((r_tile, HW), lambda i: (i, 0))]
        out_specs = pl.BlockSpec((r_tile, 1), lambda i: (i, 0))
        scratch_shapes = []
        dim_sem = ("parallel",)
    else:
        grid = (pl.cdiv(R, r_tile), num_k)
        kernel = functools.partial(_gap_tiled_kernel, hw=HW, hw_tile=hw_tile,
                                   num_k=num_k)
        in_specs = [pl.BlockSpec((r_tile, hw_tile), lambda i, k: (i, k))]
        out_specs = pl.BlockSpec((r_tile, 1), lambda i, k: (i, 0))
        scratch_shapes = [pltpu.VMEM((r_tile, 128), jnp.float32)]
        dim_sem = ("parallel", "arbitrary")

    out = pl.pallas_call(
        kernel,
        out_shape=jax.ShapeDtypeStruct((R, 1), dtype),
        grid_spec=pltpu.PrefetchScalarGridSpec(
            num_scalar_prefetch=0,
            grid=grid,
            in_specs=in_specs,
            out_specs=out_specs,
            scratch_shapes=scratch_shapes,
        ),
        compiler_params=pltpu.CompilerParams(
            dimension_semantics=dim_sem,
            vmem_limit_bytes=vmem_limit_bytes,
        ),
    )(x)
    return out.reshape(N, C)


if __name__ == "__main__":
    key = jax.random.PRNGKey(0)

    # Primary: batch=2, channels=4, 16x16 spatial (fast full-HW path).
    x = jax.random.normal(key, (2, 4, 16, 16), dtype=jnp.float32)
    y = global_avg_pool2d(x)
    jax.block_until_ready(y)
    assert y.shape == (2, 4)
    assert jnp.allclose(y, jnp.mean(x, axis=(2, 3)), atol=1e-5, rtol=1e-5)

    # Ragged spatial extent (full-dim, non-128-multiple lane block; no mask).
    x2 = jax.random.normal(jax.random.PRNGKey(1), (2, 4, 5, 7), dtype=jnp.float32)
    y2 = global_avg_pool2d(x2)
    jax.block_until_ready(y2)
    assert jnp.allclose(y2, jnp.mean(x2, axis=(2, 3)), atol=1e-5, rtol=1e-5)

    # bf16 input (exercises dtype-aware sublane sizing + f32 accumulation).
    x3 = jax.random.normal(jax.random.PRNGKey(2), (2, 4, 8, 8), dtype=jnp.bfloat16)
    y3 = global_avg_pool2d(x3)
    jax.block_until_ready(y3)
    y3_ref = jnp.mean(x3.astype(jnp.float32), axis=(2, 3)).astype(jnp.bfloat16)
    assert jnp.allclose(y3.astype(jnp.float32), y3_ref.astype(jnp.float32),
                        atol=2e-2, rtol=2e-2)

    # Force the tiled-reduction path (tiny block budget) with a ragged tail.
    x4 = jax.random.normal(jax.random.PRNGKey(3), (2, 4, 24, 24), dtype=jnp.float32)
    y4 = global_avg_pool2d(x4, target_block_bytes=8 * 256 * 4)
    jax.block_until_ready(y4)
    assert jnp.allclose(y4, jnp.mean(x4, axis=(2, 3)), atol=1e-5, rtol=1e-5)

    # Force the tiled-reduction path with an exact tile multiple (no mask).
    x5 = jax.random.normal(jax.random.PRNGKey(4), (2, 4, 16, 32), dtype=jnp.float32)
    y5 = global_avg_pool2d(x5, target_block_bytes=8 * 256 * 4)
    jax.block_until_ready(y5)
    assert jnp.allclose(y5, jnp.mean(x5, axis=(2, 3)), atol=1e-5, rtol=1e-5)

    print("KERNEL_OK")
</pallas_src>

<mosaic_0001>
module attributes {stable_mosaic.version = 11 : i64} {
  func.func @_gap_single_kernel(%arg0: i32, %arg1: memref<8x256xf32, #tpu.memory_space<vmem>>, %arg2: memref<8x1xf32, #tpu.memory_space<vmem>>) attributes {dimension_semantics = [#tpu.dimension_semantics<parallel>], iteration_bounds = array<i64: 1>, scalar_prefetch = 0 : i64, scratch_operands = 0 : i64, tpu.core_type = #tpu.core_type<tc>, window_params = [{transform_indices = @transform_0, window_bounds = array<i64: 8, 256>}, {transform_indices = @transform_1, window_bounds = array<i64: 8, 1>}]} {
    %c0 = arith.constant 0 : index
    %c0_0 = arith.constant 0 : index
    %0 = vector.load %arg1[%c0, %c0_0] : memref<8x256xf32, #tpu.memory_space<vmem>>, vector<8x256xf32>
    %cst = arith.constant dense<0.000000e+00> : vector<8xf32>
    %1 = vector.multi_reduction <add>, %0, %cst [1] : vector<8x256xf32> to vector<8xf32>
    %2 = vector.shape_cast %1 : vector<8xf32> to vector<8x1xf32>
    %cst_1 = arith.constant 2.560000e+02 : f32
    %3 = vector.broadcast %cst_1 : f32 to vector<8x1xf32>
    %4 = arith.divf %2, %3 : vector<8x1xf32>
    %c0_2 = arith.constant 0 : index
    %c0_3 = arith.constant 0 : index
    %5 = vector.load %arg2[%c0_2, %c0_3] : memref<8x1xf32, #tpu.memory_space<vmem>>, vector<8x1xf32>
    tpu.vector_store %arg2[%c0_2, %c0_3], %4 {strides = array<i32>} : memref<8x1xf32, #tpu.memory_space<vmem>>, vector<8x1xf32>,
    return
  }
  func.func @transform_0(%arg0: i32) -> (i32, i32) {
    %c0_i32 = arith.constant 0 : i32
    %c0_i32_0 = arith.constant 0 : i32
    return %arg0, %c0_i32 : i32, i32
  }
  func.func @transform_1(%arg0: i32) -> (i32, i32) {
    %c0_i32 = arith.constant 0 : i32
    %c0_i32_0 = arith.constant 0 : i32
    return %arg0, %c0_i32 : i32, i32
  }
}

</mosaic_0001>

<llo_original>
// kernel: tpu_custom_call.1
$region0: #{tpu_custom_call.1}
  #allocation0 [shape = 'u32[]', space=smem, size = 0x4, offset = 0x4, fixed_abs, tag = 'smem constant byte address 0x4 - core index']
  #allocation1 [shape = 'u32[72,128]{1,0:T(1,128)}', space=vmem, size = 0x9000, scoped, tag = 'internal scratch']
  %s0 = inlined_call_operand.hbm [shape: f32[8,256], index: 0, kind: input, shape index: {}]
  %s1 = inlined_call_operand.vmem [shape: f32[8,1], index: 1, kind: output, shape index: {}]
  %s2 = sld [smem:[#allocation0]]
  $region18: #{tpu_custom_call.1} parent=0
    _
  %s4 = ssub.s32 1, %s2
  %s5 = scalar_select 0, %s4, %s2
  $region1: #{tpu_custom_call.1} parent=0
    #allocation2 [shape = 'u8[8192]{0}', space=vmem, size = 0x2000, scoped, tag = 'input window, operand 0, single buffered']
    #allocation3 [shape = 's32[1]{0}', space=sflag, size = 0x4, scoped, tag = 'scoped memory for tpu_custom_call.1']
    %6 = vsyncpa [#allocation3], 0
    // Predicated region
    $region2: #{tpu_custom_call.1} parent=1 // pred_check
      _
    $region3: #{tpu_custom_call.1} parent=1 // pred_check_branch
      %8 = sbr.rel (0) target = $region5
    $region4: #{tpu_custom_call.1} parent=1 // pred_region
      %10 = vsyncadd [#allocation3], 0
      %s12 = sshll.u32 %s0, 4
      %s13 = int_to_ptr.hbm [resolvable:$true] %s12
      %s14 = sshll.u32 [#allocation2], 4
      %s15 = int_to_ptr.vmem [resolvable:$true] %s14
      %17 = dma.hbm_to_vmem [thread:$0]  %s13, 256, %s15, [#allocation3]
    $region5: #{tpu_custom_call.1} parent=1 // pred_fallthru
      _
    // Predicated region
    $region6: #{tpu_custom_call.1} parent=1 // pred_check
      _
    $region7: #{tpu_custom_call.1} parent=1 // pred_check_branch
      %19 = sbr.rel (0) target = $region9
    $region8: #{tpu_custom_call.1} parent=1 // pred_region
      %21 = dma.done [#allocation3], 256
    $region9: #{tpu_custom_call.1} parent=1 // pred_fallthru
      _
    %v22 = vld [vmem:[#allocation2] sm:$0xff]
    %v23 = vld [vmem:[#allocation2 + $0x8] sm:$0xff]
    %v24 = vadd.f32 %v22, %v23
    %25 = vadd.xlane.f32.xlu0 %v24
    %v26 = vpop.xlane.xlu0 %25
    %v27 = vrcp.pop 256.0
    %v28 = vmul.f32 256.0, %v27
    %v29 = vsub.f32 1.0, %v28
    %v30 = vmul.f32 %v27, %v29
    %v31 = vadd.f32 %v27, %v30
    %vm32 = vweird.f32 %v27
    %v33 = vsel %vm32, %v27, %v31
    %v34 = vmul.f32 %v26, %v33
    %vm35 = vcmask 7168
    %36 = vst.msk [vmem:[%s1] sm:$0xff] %vm35, %v34
    // Predicated region
    $region10: #{tpu_custom_call.1} parent=1 // pred_check
      _
    $region11: #{tpu_custom_call.1} parent=1 // pred_check_branch
      %38 = sbr.rel (0) target = $region13
    $region12: #{tpu_custom_call.1} parent=1 // pred_region
      _
    $region13: #{tpu_custom_call.1} parent=1 // pred_fallthru
      _
    // Predicated region
    $region14: #{tpu_custom_call.1} parent=1 // pred_check
      _
    $region15: #{tpu_custom_call.1} parent=1 // pred_check_branch
      %40 = sbr.rel (0) target = $region17
    $region16: #{tpu_custom_call.1} parent=1 // pred_region
      _
    $region17: #{tpu_custom_call.1} parent=1 // pred_fallthru
      _
    %41 = vsyncpa [#allocation3], 1

</llo_original>
